<compile_context>
chip_gen: v6e
topology: v6e:2x2x1
jax: 0.10.0
libtpu: 0.0.40
codegen_flags: <defaults>
</compile_context>

<pallas_src>
import functools

import jax
import jax.numpy as jnp
from jax import lax
from jax.experimental import pallas as pl
from jax.experimental.pallas import tpu as pltpu


def _round_up(x, m):
    return ((x + m - 1) // m) * m


def _gather_folded_kernel(ids_ref, tbl_ref, o_ref):
    # ids_ref: (tm, 1)   int32 token ids (one token per output row)
    # tbl_ref: (Vp, Hp)  f32 folded (embedding @ W^T) table, VMEM-resident
    # o_ref  : (tm, Hp)  f32 lane-dense output tile
    ids = ids_ref[...]                                       # (tm, 1)
    tm = ids.shape[0]
    vp = tbl_ref.shape[0]
    # One-hot row selection on the MXU == exact embedding-row gather.
    iota = lax.broadcasted_iota(jnp.int32, (tm, vp), 1)
    onehot = (iota == ids).astype(tbl_ref.dtype)             # (tm, Vp)
    o_ref[...] = jnp.dot(
        onehot, tbl_ref[...], preferred_element_type=jnp.float32
    ).astype(o_ref.dtype)


def embed_linear_pallas(ids_flat, folded_padded, *, row_tile=1024):
    """y[m, :] = folded_padded[ids[m], :] for a flat int32 token stream."""
    M = ids_flat.shape[0]
    Vp, Hp = folded_padded.shape
    assert Vp % 128 == 0 and Hp % 128 == 0

    # ---- row-tile sizing -------------------------------------------------
    Mp8 = _round_up(max(M, 1), 8)
    try:
        vmem_bytes = int(pltpu.get_tpu_info().vmem_capacity_bytes)
    except Exception:                 # conservative (v7x-sized) fallback
        vmem_bytes = 64 << 20
    # Per-step scratch budget (~1/8 of physical VMEM): one-hot + iota + the
    # double-buffered output rows.  128 MiB parts (v5e/v6e) therefore get
    # larger row tiles than v7x (64 MiB).
    budget = max(1 << 20, vmem_bytes // 8)
    per_row_bytes = (2 * Vp + 2 * Hp) * 4
    cap = max(8, (budget // per_row_bytes) // 8 * 8)
    tm = min(_round_up(row_tile, 8), cap, Mp8)
    # v7x megacore: keep at least 2 grid steps so the "parallel" axis can be
    # sharded across both TensorCores (no effect on single-TC v5e/v6e).
    if Mp8 // tm < 2 and Mp8 >= 16:
        tm = _round_up(pl.cdiv(Mp8, 2), 8)
    Mp = _round_up(Mp8, tm)
    grid = (Mp // tm,)

    ids2d = jnp.pad(ids_flat.astype(jnp.int32), (0, Mp - M)).reshape(Mp, 1)

    cost = pl.CostEstimate(
        flops=2 * Mp * Vp * Hp,
        transcendentals=0,
        bytes_accessed=Mp * 4 + Vp * Hp * 4 + Mp * Hp * 4,
    )

    out = pl.pallas_call(
        _gather_folded_kernel,
        out_shape=jax.ShapeDtypeStruct((Mp, Hp), jnp.float32),
        grid_spec=pltpu.PrefetchScalarGridSpec(
            num_scalar_prefetch=0,
            grid=grid,
            in_specs=[
                pl.BlockSpec((tm, 1), lambda i: (i, 0)),    # token ids
                pl.BlockSpec((Vp, Hp), lambda i: (0, 0)),   # folded table, resident
            ],
            out_specs=pl.BlockSpec((tm, Hp), lambda i: (i, 0)),
        ),
        compiler_params=pltpu.CompilerParams(
            dimension_semantics=("parallel",),
            vmem_limit_bytes=int(vmem_bytes // 2),
        ),
        cost_estimate=cost,
    )(ids2d, folded_padded)

    return out[:M]                      # (M, Hp); caller slices Hp -> H


@functools.partial(jax.jit, static_argnames=("hidden_dim",))
def _embed_encoder_forward(folded_padded, prem, hypo, *, hidden_dim):
    B, Sp = prem.shape
    _, Sh = hypo.shape
    # Merge prem + hypo into one flat token stream -> a single pallas_call.
    ids = jnp.concatenate([prem.reshape(-1), hypo.reshape(-1)]).astype(jnp.int32)
    y = embed_linear_pallas(ids, folded_padded)[:, :hidden_dim]
    n_prem = B * Sp
    prem_out = y[:n_prem].reshape(B, Sp, hidden_dim)
    hypo_out = y[n_prem:n_prem + B * Sh].reshape(B, Sh, hidden_dim)
    return prem_out, hypo_out


class EmbedEncoderPallas:
    """JAX/Pallas re-implementation of the PyTorch EmbedEncoder module."""

    def __init__(self, input_size, embedding_dim, hidden_dim, para_init, key):
        self.embedding_dim = embedding_dim
        self.hidden_dim = hidden_dim
        k_emb, k_lin = jax.random.split(key)

        # nn.Embedding default init: N(0, 1); padding_idx=100 row zeroed.
        emb = jax.random.normal(k_emb, (input_size, embedding_dim), jnp.float32)
        if input_size > 100:
            emb = emb.at[100].set(0.0)
        self.embed_table = emb

        # nn.Linear(embedding_dim, hidden_dim, bias=False) with
        # weight.data.normal_(0, para_init); weight shape (H, E).
        w = para_init * jax.random.normal(
            k_lin, (hidden_dim, embedding_dim), jnp.float32
        )
        self.w_t = w.T  # (E, H): y = x @ w_t == x @ W^T

        # Fold the no-bias linear into the table ONCE (amortized over every
        # token of every call), then zero-pad vocab/hidden to lane-dense
        # multiples of 128 for the kernel.
        folded = jnp.dot(emb, self.w_t, precision=lax.Precision.HIGHEST)
        vp = _round_up(input_size, 128)
        hp = _round_up(hidden_dim, 128)
        self.folded_padded = jnp.pad(
            folded, ((0, vp - input_size), (0, hp - hidden_dim))
        )
        # TODO(synk): optionally cast folded_padded to bf16 (halves the
        # resident-table footprint and one-hot work) when the model tolerates it.

    def forward(self, prem, hypo):
        return _embed_encoder_forward(
            self.folded_padded, prem, hypo, hidden_dim=self.hidden_dim
        )


if __name__ == "__main__":
    # Small, module-consistent shapes.
    B, S = 2, 8          # batch, sequence length
    V = 128              # vocab (input_size), > padding_idx=100
    E, H = 32, 32        # embedding_dim, hidden_dim
    para_init = 0.01

    key = jax.random.PRNGKey(0)
    k_model, k_prem, k_hypo = jax.random.split(key, 3)

    model = EmbedEncoderPallas(V, E, H, para_init, k_model)

    prem = jax.random.randint(k_prem, (B, S), 0, V, dtype=jnp.int32)
    hypo = jax.random.randint(k_hypo, (B, S), 0, V, dtype=jnp.int32)

    prem_out, hypo_out = model.forward(prem, hypo)
    jax.block_until_ready((prem_out, hypo_out))

    # Reference check against plain JAX (gather, then no-bias linear).
    prem_ref = jnp.dot(
        jnp.take(model.embed_table, prem, axis=0).reshape(-1, E),
        model.w_t, precision=lax.Precision.HIGHEST,
    ).reshape(B, -1, H)
    hypo_ref = jnp.dot(
        jnp.take(model.embed_table, hypo, axis=0).reshape(-1, E),
        model.w_t, precision=lax.Precision.HIGHEST,
    ).reshape(B, -1, H)
    assert prem_out.shape == (B, S, H) and hypo_out.shape == (B, S, H)
    assert jnp.allclose(prem_out, prem_ref, atol=1e-5, rtol=1e-4)
    assert jnp.allclose(hypo_out, hypo_ref, atol=1e-5, rtol=1e-4)

    print("KERNEL_OK")
</pallas_src>

<mosaic_0001>
module attributes {stable_mosaic.version = 11 : i64} {
  func.func @_gather_folded_kernel(%arg0: i32, %arg1: memref<16x1xi32, #tpu.memory_space<vmem>>, %arg2: memref<128x128xf32, #tpu.memory_space<vmem>>, %arg3: memref<16x128xf32, #tpu.memory_space<vmem>>) attributes {dimension_semantics = [#tpu.dimension_semantics<parallel>], iteration_bounds = array<i64: 2>, scalar_prefetch = 0 : i64, scratch_operands = 0 : i64, tpu.core_type = #tpu.core_type<tc>, window_params = [{transform_indices = @transform_0, window_bounds = array<i64: 16, 1>}, {pipeline_mode = #tpu.pipeline_mode<synchronous>, transform_indices = @transform_1, window_bounds = array<i64: 128, 128>}, {transform_indices = @transform_2, window_bounds = array<i64: 16, 128>}]} {
    %c0 = arith.constant 0 : index
    %c0_0 = arith.constant 0 : index
    %0 = vector.load %arg1[%c0, %c0_0] : memref<16x1xi32, #tpu.memory_space<vmem>>, vector<16x1xi32>
    %1 = tpu.iota {dimensions = array<i32: 1>} : vector<16x128xi32>
    %2 = vector.broadcast %0 : vector<16x1xi32> to vector<16x128xi32>
    %3 = arith.cmpi eq, %1, %2 : vector<16x128xi32>
    %4 = arith.extui %3 : vector<16x128xi1> to vector<16x128xi32>
    %5 = arith.sitofp %4 : vector<16x128xi32> to vector<16x128xf32>
    %c0_1 = arith.constant 0 : index
    %c0_2 = arith.constant 0 : index
    %6 = vector.load %arg2[%c0_1, %c0_2] : memref<128x128xf32, #tpu.memory_space<vmem>>, vector<128x128xf32>
    %cst = arith.constant dense<0.000000e+00> : vector<16x128xf32>
    %7 = tpu.matmul %5, %6, %cst {dimension_numbers = #tpu.dot_dimension_numbers<[1], [0], [0], [1], [0, 0, 1, 1], [], []>} : vector<16x128xf32>, vector<128x128xf32>, vector<16x128xf32> -> vector<16x128xf32>
    %c0_3 = arith.constant 0 : index
    %c0_4 = arith.constant 0 : index
    %8 = vector.load %arg3[%c0_3, %c0_4] : memref<16x128xf32, #tpu.memory_space<vmem>>, vector<16x128xf32>
    tpu.vector_store %arg3[%c0_3, %c0_4], %7 {strides = array<i32>} : memref<16x128xf32, #tpu.memory_space<vmem>>, vector<16x128xf32>,
    return
  }
  func.func @transform_0(%arg0: i32) -> (i32, i32) {
    %c0_i32 = arith.constant 0 : i32
    %c0_i32_0 = arith.constant 0 : i32
    return %arg0, %c0_i32 : i32, i32
  }
  func.func @transform_1(%arg0: i32) -> (i32, i32) {
    %c0_i32 = arith.constant 0 : i32
    %c0_i32_0 = arith.constant 0 : i32
    %c0_i32_1 = arith.constant 0 : i32
    return %c0_i32, %c0_i32_0 : i32, i32
  }
  func.func @transform_2(%arg0: i32) -> (i32, i32) {
    %c0_i32 = arith.constant 0 : i32
    %c0_i32_0 = arith.constant 0 : i32
    return %arg0, %c0_i32 : i32, i32
  }
}

</mosaic_0001>

<llo_original>
// kernel: _embed_encoder_forward.1
$region0: #{_embed_encoder_forward.1}
  #allocation0 [shape = 'u32[]', space=smem, size = 0x4, offset = 0x4, fixed_abs, tag = 'smem constant byte address 0x4 - core index']
  #allocation1 [shape = 'u32[144,128]{1,0:T(1,128)}', space=vmem, size = 0x12000, scoped, tag = 'internal scratch']
  %s0 = inlined_call_operand.vmem [shape: s32[32,1], index: 0, kind: input, shape index: {}]
  %s1 = inlined_call_operand.hbm [shape: f32[128,128], index: 1, kind: input, shape index: {}]
  %s2 = inlined_call_operand.vmem [shape: f32[32,128], index: 2, kind: output, shape index: {}]
  %s3 = sld [smem:[#allocation0]]
  $region45: #{_embed_encoder_forward.1} parent=0
    _
  %s5 = ssub.s32 1, %s3
  %s6 = scalar_select 0, %s5, %s3
  $region1: #{_embed_encoder_forward.1} parent=0
    #allocation2 [shape = 'u8[65536]{0}', space=vmem, size = 0x10000, scoped, tag = 'input window, operand 1, single buffered']
    #allocation3 [shape = 's32[2]{0}', space=sflag, size = 0x8, scoped, tag = 'scoped memory for _embed_encoder_forward.1']
    %7 = vsyncpa [#allocation3], 0
    loop: start=0, step=1, limit=4
    $region2: #{_embed_encoder_forward.1} parent=1 // loop_pre_header
      _
    $region3: #{_embed_encoder_forward.1} parent=1 // loop_header
      %s9 = sphi 0, %s13
      %p10 = scmp.ge.s32.totalorder %s9, 4
      %s19 = sphi 0, %s21
      %s22 = sphi 0, %s19
      %s23 = sphi 0, %s22
      %s39 = sphi 0, %s23
      %s43 = sphi 0, %s43
      %s45 = sphi 0, %s43
      %s46 = sphi 0, %s45
      %s60 = sphi 0, %s46
      %s66 = sphi 0, %s68
      %s69 = sphi 0, %s66
      %s70 = sphi 0, %s69
      %s86 = sphi 0, %s70
    $region4: #{_embed_encoder_forward.1} parent=1 // loop_header_branch
      %12 = sbr.rel (%p10) target = $region8
    $region5: #{_embed_encoder_forward.1} parent=1 // loop_body
      %s14 = ssub.s32 %s9, 1
      %s15 = ssub.s32 %s9, 2
      %s16 = sadd.s32 %s9, 1
      %s17 = ssub.s32 %s9, %s16
      %p18 = scmp.eq.s32.totalorder %s17, 0
      %s20 = sadd.s32 %s19, 1
      %s21 = scalar_select %p18, %s19, %s20
      %p24 = pneg %p18
      %p25 = scmp.eq.s32.totalorder %s9, 1
      %p26 = por %p24, %p25
      %p27 = scmp.ne.s32.totalorder %s19, %s22
      %p28 = scmp.eq.s32.totalorder %s9, 0
      %p29 = por %p27, %p28
      %p30 = scmp.ne.s32.totalorder %s19, %s22
      %p31 = scmp.eq.s32.totalorder %s14, 1
      %p32 = por %p30, %p31
      %p33 = scmp.ne.s32.totalorder %s22, %s23
      %p34 = scmp.eq.s32.totalorder %s14, 0
      %p35 = por %p33, %p34
      %p36 = scmp.ne.s32.totalorder %s22, %s23
      %p37 = scmp.eq.s32.totalorder %s15, 1
      %p38 = por %p36, %p37
      %p40 = scmp.ne.s32.totalorder %s23, %s39
      %p41 = scmp.eq.s32.totalorder %s15, 0
      %p42 = por %p40, %p41
      %s44 = sadd.s32 %s43, 1
      %p47 = scmp.eq.s32.totalorder %s9, 1
      %p48 = scmp.ne.s32.totalorder %s43, %s45
      %p49 = scmp.eq.s32.totalorder %s9, 0
      %p50 = por %p48, %p49
      %p51 = scmp.ne.s32.totalorder %s43, %s45
      %p52 = scmp.eq.s32.totalorder %s14, 1
      %p53 = por %p51, %p52
      %p54 = scmp.ne.s32.totalorder %s45, %s46
      %p55 = scmp.eq.s32.totalorder %s14, 0
      %p56 = por %p54, %p55
      %p57 = scmp.ne.s32.totalorder %s45, %s46
      %p58 = scmp.eq.s32.totalorder %s15, 1
      %p59 = por %p57, %p58
      %p61 = scmp.ne.s32.totalorder %s46, %s60
      %p62 = scmp.eq.s32.totalorder %s15, 0
      %p63 = por %p61, %p62
      %s64 = ssub.s32 %s9, %s16
      %p65 = scmp.eq.s32.totalorder %s64, 0
      %s67 = sadd.s32 %s66, 1
      %s68 = scalar_select %p65, %s66, %s67
      %p71 = pneg %p65
      %p72 = scmp.eq.s32.totalorder %s9, 1
      %p73 = por %p71, %p72
      %p74 = scmp.ne.s32.totalorder %s66, %s69
      %p75 = scmp.eq.s32.totalorder %s9, 0
      %p76 = por %p74, %p75
      %p77 = scmp.ne.s32.totalorder %s66, %s69
      %p78 = scmp.eq.s32.totalorder %s14, 1
      %p79 = por %p77, %p78
      %p80 = scmp.ne.s32.totalorder %s69, %s70
      %p81 = scmp.eq.s32.totalorder %s14, 0
      %p82 = por %p80, %p81
      %p83 = scmp.ne.s32.totalorder %s69, %s70
      %p84 = scmp.eq.s32.totalorder %s15, 1
      %p85 = por %p83, %p84
      %p87 = scmp.ne.s32.totalorder %s70, %s86
      %p88 = scmp.eq.s32.totalorder %s15, 0
      %p89 = por %p87, %p88
      %p90 = scmp.le.s32.totalorder 1, %s9
      %p91 = scmp.lt.s32.totalorder %s9, 3
      %p92 = pnand %p90, %p91
      %p93 = pneg %p92
      // Predicated region
      $region9: #{_embed_encoder_forward.1} parent=5 // pred_check
        _
      $region10: #{_embed_encoder_forward.1} parent=5 // pred_check_branch
        %95 = sbr.rel (%p92) target = $region12
      $region11: #{_embed_encoder_forward.1} parent=5 // pred_region
        %s96 = ssub.s32 %s9, 1
        // Predicated region
        $region13: #{_embed_encoder_forward.1} parent=11 // pred_check
          %p97 = pneg %p56
        $region14: #{_embed_encoder_forward.1} parent=11 // pred_check_branch
          %99 = sbr.rel (%p97) target = $region16
        $region15: #{_embed_encoder_forward.1} parent=11 // pred_region
          %s101 = ssub.s32 2048, 2048
          %102 = vsyncadd [#allocation3], %s101
          %s103 = sshll.u32 [#allocation2], 4
          %s104 = int_to_ptr.vmem [resolvable:$true] %s103
          %109 = dma.hbm_to_vmem [thread:$0]  %s1, 2048, %s104, [#allocation3], 128, 128, 8
        $region16: #{_embed_encoder_forward.1} parent=11 // pred_fallthru
          _
      $region12: #{_embed_encoder_forward.1} parent=5 // pred_fallthru
        _
      %p110 = scmp.lt.s32.totalorder %s9, 2
      // Predicated region
      $region17: #{_embed_encoder_forward.1} parent=5 // pred_check
        %p111 = pneg %p110
      $region18: #{_embed_encoder_forward.1} parent=5 // pred_check_branch
        %113 = sbr.rel (%p111) target = $region20
      $region19: #{_embed_encoder_forward.1} parent=5 // pred_region
        // Predicated region
        $region21: #{_embed_encoder_forward.1} parent=19 // pred_check
          %p114 = pneg %p29
        $region22: #{_embed_encoder_forward.1} parent=19 // pred_check_branch
          %116 = sbr.rel (%p114) target = $region24
        $region23: #{_embed_encoder_forward.1} parent=19 // pred_region
          %s117 = smul.u32 2, %s9
          %p118 = scmp.lt.s32.totalorder %s117, 3
          %s119 = scalar_select %p118, %s117, 3
          %s120 = smul.addr %s119, 8
          %s121 = scalar_lea.vmem %s0, %s120
          %s122 = smul.u32 2, %s9
        $region24: #{_embed_encoder_forward.1} parent=19 // pred_fallthru
          _
      $region20: #{_embed_encoder_forward.1} parent=5 // pred_fallthru
        _
      %p123 = scmp.le.s32.totalorder 1, %s9
      %p124 = scmp.lt.s32.totalorder %s9, 3
      %p125 = pnand %p123, %p124
      %p126 = pneg %p125
      // Predicated region
      $region25: #{_embed_encoder_forward.1} parent=5 // pred_check
        _
      $region26: #{_embed_encoder_forward.1} parent=5 // pred_check_branch
        %128 = sbr.rel (%p125) target = $region28
      $region27: #{_embed_encoder_forward.1} parent=5 // pred_region
        %s129 = ssub.s32 %s9, 1
        // Predicated region
        $region29: #{_embed_encoder_forward.1} parent=27 // pred_check
          %p130 = pneg %p56
        $region30: #{_embed_encoder_forward.1} parent=27 // pred_check_branch
          %132 = sbr.rel (%p130) target = $region32
        $region31: #{_embed_encoder_forward.1} parent=27 // pred_region
          %133 = dma.done [#allocation3], 2048
        $region32: #{_embed_encoder_forward.1} parent=27 // pred_fallthru
          _
        %s134 = smul.u32 2, %s14
        %p135 = scmp.lt.s32.totalorder %s134, 3
        %s136 = scalar_select %p135, %s134, 3
        %s137 = smul.addr %s136, 8
        %s138 = scalar_lea.vmem %s0, %s137
        %p139 = pneg %p35
        %p140 = pneg %p32
        %p141 = pneg %p56
        %p142 = pneg %p53
        %p143 = pneg %p82
        %p144 = pneg %p79
        %s145 = smul.u32 2, %s14
        %p146 = scmp.lt.s32.totalorder %s145, 3
        %s147 = scalar_select %p146, %s145, 3
        %s148 = smul.addr %s147, 8
        %s149 = scalar_lea.vmem %s2, %s148
        %s150 = smul.u32 2, %s14
        %p151 = scmp.lt.s32.totalorder %s150, 3
        %s152 = scalar_select %p151, %s150, 3
        %s153 = smul.addr %s152, 8
        %s154 = scalar_lea.vmem %s0, %s153
        %s155 = smul.u32 2, %s14
        %s156 = smul.u32 2, %s14
        %p157 = scmp.lt.s32.totalorder %s156, 3
        %s158 = scalar_select %p157, %s156, 3
        %s159 = smul.addr %s158, 8
        %s160 = scalar_lea.vmem %s2, %s159
        %s161 = smul.u32 2, %s14
        %v162 = vld [vmem:[%s154] sm:$0xff]
        %v163 = vld [vmem:[%s154 + $0x8] sm:$0xff]
        %v164 = vlaneseq
        %v165 = vand.u32 %v164, 127
        %166 = vset.pattern.permute.xlu0 0
        %167 = vperm.xlu0 %166, %v162
        %v168 = vpop.permute.xlu0 %167
        %169 = vset.pattern.permute.xlu0 0
        %170 = vperm.xlu0 %169, %v163
        %v171 = vpop.permute.xlu0 %170
        %vm172 = vcmp.eq.s32.totalorder %v165, %v168
        %vm173 = vcmp.eq.s32.totalorder %v165, %v171
        %v174 = vsel %vm172, 1, 0
        %v175 = vsel %vm173, 1, 0
        %v176 = vcvt.s32.f32 %v174
        %v177 = vcvt.s32.f32 %v175
        %v178 = vld [vmem:[#allocation2] sm:$0xff]
        %v179 = vld [vmem:[#allocation2 + $0x8] sm:$0xff]
        %v180 = vld [vmem:[#allocation2 + $0x10] sm:$0xff]
        %v181 = vld [vmem:[#allocation2 + $0x18] sm:$0xff]
        %v182 = vld [vmem:[#allocation2 + $0x20] sm:$0xff]
        %v183 = vld [vmem:[#allocation2 + $0x28] sm:$0xff]
        %v184 = vld [vmem:[#allocation2 + $0x30] sm:$0xff]
        %v185 = vld [vmem:[#allocation2 + $0x38] sm:$0xff]
        %v186 = vld [vmem:[#allocation2 + $0x40] sm:$0xff]
        %v187 = vld [vmem:[#allocation2 + $0x48] sm:$0xff]
        %v188 = vld [vmem:[#allocation2 + $0x50] sm:$0xff]
        %v189 = vld [vmem:[#allocation2 + $0x58] sm:$0xff]
        %v190 = vld [vmem:[#allocation2 + $0x60] sm:$0xff]
        %v191 = vld [vmem:[#allocation2 + $0x68] sm:$0xff]
        %v192 = vld [vmem:[#allocation2 + $0x70] sm:$0xff]
        %v193 = vld [vmem:[#allocation2 + $0x78] sm:$0xff]
        %194 = vmatprep.subr.mxu0 0.0
        %195 = vmatpush1.msra.mxu0 %v193
        %196 = vmatprep.subr.mxu0 0.0
        %197 = vmatpush1.msra.mxu0 %v192
        %198 = vmatprep.subr.mxu0 0.0
        %199 = vmatpush1.msra.mxu0 %v191
        %200 = vmatprep.subr.mxu0 0.0
        %201 = vmatpush1.msra.mxu0 %v190
        %202 = vmatprep.subr.mxu0 0.0
        %203 = vmatpush1.msra.mxu0 %v189
        %204 = vmatprep.subr.mxu0 0.0
        %205 = vmatpush1.msra.mxu0 %v188
        %206 = vmatprep.subr.mxu0 0.0
        %207 = vmatpush1.msra.mxu0 %v187
        %208 = vmatprep.subr.mxu0 0.0
        %209 = vmatpush1.msra.mxu0 %v186
        %210 = vmatprep.subr.mxu0 0.0
        %211 = vmatpush1.msra.mxu0 %v185
        %212 = vmatprep.subr.mxu0 0.0
        %213 = vmatpush1.msra.mxu0 %v184
        %214 = vmatprep.subr.mxu0 0.0
        %215 = vmatpush1.msra.mxu0 %v183
        %216 = vmatprep.subr.mxu0 0.0
        %217 = vmatpush1.msra.mxu0 %v182
        %218 = vmatprep.subr.mxu0 0.0
        %219 = vmatpush1.msra.mxu0 %v181
        %220 = vmatprep.subr.mxu0 0.0
        %221 = vmatpush1.msra.mxu0 %v180
        %222 = vmatprep.subr.mxu0 0.0
        %223 = vmatpush1.msra.mxu0 %v179
        %224 = vmatprep.subr.mxu0 0.0
        %225 = vmatpush1.msra.mxu0 %v178
        %226 = vmatprep.subr.mxu0 0.0
        %227 = vmatpush2.msra.mxu0 0.0
        %228 = vmatprep.subr.mxu0 0.0
        %229 = vmatpush2.msra.mxu0 0.0
        %230 = vmatprep.subr.mxu0 0.0
        %231 = vmatpush2.msra.mxu0 0.0
        %232 = vmatprep.subr.mxu0 0.0
        %233 = vmatpush2.msra.mxu0 0.0
        %234 = vmatprep.subr.mxu0 0.0
        %235 = vmatpush2.msra.mxu0 0.0
        %236 = vmatprep.subr.mxu0 0.0
        %237 = vmatpush2.msra.mxu0 0.0
        %238 = vmatprep.subr.mxu0 0.0
        %239 = vmatpush2.msra.mxu0 0.0
        %240 = vmatprep.subr.mxu0 0.0
        %241 = vmatpush2.msra.mxu0 0.0
        %242 = vmatprep.subr.mxu0 0.0
        %243 = vmatpush2.msra.mxu0 0.0
        %244 = vmatprep.subr.mxu0 0.0
        %245 = vmatpush2.msra.mxu0 0.0
        %246 = vmatprep.subr.mxu0 0.0
        %247 = vmatpush2.msra.mxu0 0.0
        %248 = vmatprep.subr.mxu0 0.0
        %249 = vmatpush2.msra.mxu0 0.0
        %250 = vmatprep.subr.mxu0 0.0
        %251 = vmatpush2.msra.mxu0 0.0
        %252 = vmatprep.subr.mxu0 0.0
        %253 = vmatpush2.msra.mxu0 0.0
        %254 = vmatprep.subr.mxu0 0.0
        %255 = vmatpush2.msra.mxu0 0.0
        %256 = vmatprep.subr.mxu0 0.0
        %257 = vmatpush2.msra.mxu0 0.0
        %258 = vmatprep.mubr.f32.mxu0 0.0
        %259 = vmatmul.mubr.f32.gmra.mxu0 %v176
        %v260 = vpop.f32.mrf.mxu0
        %v261 = vadd.f32 0.0, %v260
        %v262 = vpop.f32.mrf.mxu0
        %263 = vmatprep.mubr.f32.mxu0 0.0
        %264 = vmatmul.mubr.f32.gmra.mxu0 %v177
        %v265 = vpop.f32.mrf.mxu0
        %v266 = vadd.f32 0.0, %v265
        %v267 = vpop.f32.mrf.mxu0
        %268 = vdwg.mxu0
        %269 = vst [vmem:[%s160] sm:$0xff] %v261
        %270 = vst [vmem:[%s160 + $0x8] sm:$0xff] %v266
        %s271 = smul.u32 2, %s14
        %p272 = scmp.lt.s32.totalorder %s271, 3
        %s273 = scalar_select %p272, %s271, 3
        %s274 = smul.addr %s273, 8
        %s275 = scalar_lea.vmem %s2, %s274
        // Predicated region
        $region33: #{_embed_encoder_forward.1} parent=27 // pred_check
          %p276 = pneg %p79
        $region34: #{_embed_encoder_forward.1} parent=27 // pred_check_branch
          %278 = sbr.rel (%p276) target = $region36
        $region35: #{_embed_encoder_forward.1} parent=27 // pred_region
          %s279 = smul.u32 2, %s14
        $region36: #{_embed_encoder_forward.1} parent=27 // pred_fallthru
          _
      $region28: #{_embed_encoder_forward.1} parent=5 // pred_fallthru
        _
      %p280 = scmp.le.s32.totalorder 2, %s9
      // Predicated region
      $region37: #{_embed_encoder_forward.1} parent=5 // pred_check
        %p281 = pneg %p280
      $region38: #{_embed_encoder_forward.1} parent=5 // pred_check_branch
        %283 = sbr.rel (%p281) target = $region40
      $region39: #{_embed_encoder_forward.1} parent=5 // pred_region
        %s284 = ssub.s32 %s9, 2
        // Predicated region
        $region41: #{_embed_encoder_forward.1} parent=39 // pred_check
          %p285 = pneg %p85
        $region42: #{_embed_encoder_forward.1} parent=39 // pred_check_branch
          %287 = sbr.rel (%p285) target = $region44
        $region43: #{_embed_encoder_forward.1} parent=39 // pred_region
          %s288 = smul.u32 2, %s15
          %p289 = scmp.lt.s32.totalorder %s288, 3
          %s290 = scalar_select %p289, %s288, 3
          %s291 = smul.addr %s290, 8
          %s292 = scalar_lea.vmem %s2, %s291
        $region44: #{_embed_encoder_forward.1} parent=39 // pred_fallthru
          _
      $region40: #{_embed_encoder_forward.1} parent=5 // pred_fallthru
        _
    $region6: #{_embed_encoder_forward.1} parent=1 // loop_footer
      %s13 = sadd.s32 1, %s9
    $region7: #{_embed_encoder_forward.1} parent=1 // loop_footer_branch
      %8 = sbr.rel target = $region3
    $region8: #{_embed_encoder_forward.1} parent=1 // loop_exit
      _
    %293 = vsyncpa [#allocation3], 1
    %s294 = scalar_lea.sflag [#allocation3], 1
    %295 = vsyncpa %s294, 1

</llo_original>
